<compile_context>
chip_gen: v6e
topology: v6e:2x2x1
jax: 0.10.0
libtpu: 0.0.40
codegen_flags: <defaults>
</compile_context>

<pallas_src>
import functools

import jax
import jax.numpy as jnp
from jax.experimental import pallas as pl
from jax.experimental.pallas import tpu as pltpu


def _graph_op_kernel(x_ref, g_ref, o_ref, *, compute_dtype):
    # x_ref: (Bn, tm, P) activations tile
    # g_ref: (Bn, P, P)  pre-summed graph (G_fixed + G0 + G1), reused across m
    # o_ref: (Bn, tm, P)
    x = x_ref[...]
    g = g_ref[...]
    if compute_dtype is not None and compute_dtype != x.dtype:
        # vreg-only cast: fewer MXU passes (v5e f32 matmul is multi-pass) at
        # zero extra HBM traffic.  Accumulation stays f32 below.
        x = x.astype(compute_dtype)
        g = g.astype(compute_dtype)
    y = jnp.einsum("bmp,bpq->bmq", x, g, preferred_element_type=jnp.float32)
    o_ref[...] = y.astype(o_ref.dtype)


def _vmem_capacity_bytes():
    """Trace-time VMEM capacity query (falls back to the smallest, v7x-per-TC)."""
    try:
        info = pltpu.get_tpu_info()
        cap = getattr(info, "vmem_capacity_bytes", None)
        if cap:
            return int(cap)
    except Exception:
        pass
    return 64 * 1024 * 1024


def _round_up8(v):
    return ((v + 7) // 8) * 8


def _pick_tm(ct, row_bytes, target_bytes):
    """CT row-tile: multiple of 8 near the byte target (or the full CT extent)."""
    if ct <= 8:
        return ct
    tm = max(8, (target_bytes // max(row_bytes, 1)))
    tm = (tm // 8) * 8
    if tm >= ct:
        return ct          # full extent is always legal
    return tm


def _largest_divisor_le(n, cap):
    best = 1
    for d in range(1, min(n, max(cap, 1)) + 1):
        if n % d == 0:
            best = d
    return best


def _pick_bn(n, per_batch_bytes, budget_bytes):
    """Largest divisor of N keeping one grid step's buffers under budget."""
    best = 1
    for d in range(1, n + 1):
        if n % d == 0 and d * per_batch_bytes <= budget_bytes:
            best = d
    return best


def graph_operation(x, g_fixed, g0, g1, *, compute_dtype=None, out_dtype=None):
    """x: (N, C, T, P); g_fixed: (N, P, P); g0, g1: (P, P). Returns (N, C, T, P)."""
    N, C, T, P = x.shape
    CT = C * T
    out_dtype = x.dtype if out_dtype is None else jnp.dtype(out_dtype)

    # Free reshape (contiguous merge of C,T) — no copy.
    x2 = x.reshape(N, CT, P)
    # Fold the shared trainable graphs into the fixed graph once, outside the
    # grid.  The extra N*P*P write is negligible vs the N*CT*P activation read.
    G = g_fixed + (g0 + g1)

    elem_in = jnp.dtype(x2.dtype).itemsize
    elem_out = jnp.dtype(out_dtype).itemsize
    elem_g = jnp.dtype(G.dtype).itemsize

    # --- Per-generation VMEM budget -----------------------------------------
    vmem_cap = _vmem_capacity_bytes()
    if vmem_cap >= 96 * 1024 * 1024:
        # v5e / v6e: 128 MiB physical VMEM -> bigger tiles, fewer grid steps.
        vmem_limit = 64 * 1024 * 1024
        tile_target = 12 * 1024 * 1024     # combined x-read + out-write tile
    else:
        # v7x: 64 MiB per TensorCore.
        vmem_limit = 32 * 1024 * 1024
        tile_target = 5 * 1024 * 1024
    step_budget = vmem_limit // 3          # double-buffered pipeline + headroom

    row_bytes = P * (elem_in + elem_out)   # one CT row: x read + y write
    g_bytes = P * P * elem_g

    tm = _pick_tm(CT, row_bytes, tile_target)
    per_batch_step_bytes = tm * row_bytes + g_bytes
    bn = _pick_bn(N, per_batch_step_bytes, step_budget)

    # --- Keep >= 2 grid steps (v7x: two TensorCores share the grid) ---------
    steps_b = N // bn
    if steps_b * pl.cdiv(CT, tm) == 1:
        if N >= 2:
            bn = _largest_divisor_le(N, N // 2)
            steps_b = N // bn
        elif CT > 8:
            tm = max(8, _round_up8(pl.cdiv(CT, 2)))

    # Prefer an even total step count (balanced split across 2 cores) as long
    # as it doesn't shrink the tile by more than ~2x.
    if (steps_b * pl.cdiv(CT, tm)) % 2 == 1 and tm > 8:
        for cand in range(tm - 8, 7, -8):
            if cand * 2 < tm:
                break
            if (steps_b * pl.cdiv(CT, cand)) % 2 == 0:
                tm = cand
                break

    grid = (steps_b, pl.cdiv(CT, tm))

    kernel = functools.partial(_graph_op_kernel, compute_dtype=compute_dtype)

    out = pl.pallas_call(
        kernel,
        out_shape=jax.ShapeDtypeStruct((N, CT, P), out_dtype),
        grid_spec=pltpu.PrefetchScalarGridSpec(
            num_scalar_prefetch=0,
            grid=grid,
            in_specs=[
                # Last block dim = full P extent (legal even when P % 128 != 0).
                pl.BlockSpec((bn, tm, P), lambda b, m: (b, m, 0)),   # x tile
                # Same block across the m axis -> fetched once per batch block.
                pl.BlockSpec((bn, P, P), lambda b, m: (b, 0, 0)),    # summed G
            ],
            out_specs=pl.BlockSpec((bn, tm, P), lambda b, m: (b, m, 0)),
        ),
        compiler_params=pltpu.CompilerParams(
            dimension_semantics=("parallel", "parallel"),
            vmem_limit_bytes=vmem_limit,
        ),
    )(x2, G)

    return out.reshape(N, C, T, P)


if __name__ == "__main__":
    key = jax.random.PRNGKey(0)

    # --- Small-shape correctness check (f32 path) ----------------------------
    N, C, T, P = 2, 4, 8, 16
    kx, kgf, k0, k1 = jax.random.split(key, 4)
    x = jax.random.normal(kx, (N, C, T, P), dtype=jnp.float32)
    g_fixed = jax.random.normal(kgf, (N, P, P), dtype=jnp.float32)
    g0 = jax.random.normal(k0, (P, P), dtype=jnp.float32)
    g1 = jax.random.normal(k1, (P, P), dtype=jnp.float32)

    y = jax.block_until_ready(graph_operation(x, g_fixed, g0, g1))
    y_ref = jnp.einsum("nctp,npq->nctq", x, g_fixed + g0 + g1)
    assert y.shape == (N, C, T, P)
    assert jnp.allclose(y, y_ref, atol=1e-4, rtol=1e-4)

    # --- Lane-unaligned particle axis (P=120, GRIP-like), no padding --------
    N2, C2, T2, P2 = 2, 2, 8, 120
    kx2, kgf2, k02, k12 = jax.random.split(jax.random.PRNGKey(1), 4)
    xb = jax.random.normal(kx2, (N2, C2, T2, P2), dtype=jnp.float32)
    gfb = jax.random.normal(kgf2, (N2, P2, P2), dtype=jnp.float32)
    g0b = jax.random.normal(k02, (P2, P2), dtype=jnp.float32)
    g1b = jax.random.normal(k12, (P2, P2), dtype=jnp.float32)
    yb = jax.block_until_ready(graph_operation(xb, gfb, g0b, g1b))
    yb_ref = jnp.einsum("nctp,npq->nctq", xb, gfb + g0b + g1b)
    assert jnp.allclose(yb, yb_ref, atol=1e-3, rtol=1e-3)

    # --- Awkward shapes: N=1 (forces a CT split) and CT not a multiple of 8 -
    N3, C3, T3, P3 = 1, 3, 7, 24
    kx3, kgf3, k03, k13 = jax.random.split(jax.random.PRNGKey(2), 4)
    xc = jax.random.normal(kx3, (N3, C3, T3, P3), dtype=jnp.float32)
    gfc = jax.random.normal(kgf3, (N3, P3, P3), dtype=jnp.float32)
    g0c = jax.random.normal(k03, (P3, P3), dtype=jnp.float32)
    g1c = jax.random.normal(k13, (P3, P3), dtype=jnp.float32)
    yc = jax.block_until_ready(graph_operation(xc, gfc, g0c, g1c))
    yc_ref = jnp.einsum("nctp,npq->nctq", xc, gfc + g0c + g1c)
    assert jnp.allclose(yc, yc_ref, atol=1e-4, rtol=1e-4)

    # --- In-kernel bf16 compute path (no wrapper astype of x) ---------------
    y_bf16 = jax.block_until_ready(
        graph_operation(x, g_fixed, g0, g1, compute_dtype=jnp.bfloat16)
    )
    rel_err = jnp.max(jnp.abs(y_bf16 - y_ref)) / jnp.max(jnp.abs(y_ref))
    assert rel_err < 2e-2

    print("KERNEL_OK")
</pallas_src>

<mosaic_0001>
module attributes {stable_mosaic.version = 11 : i64} {
  func.func @_graph_op_kernel(%arg0: i32, %arg1: i32, %arg2: memref<1x32x16xf32, #tpu.memory_space<vmem>>, %arg3: memref<1x16x16xf32, #tpu.memory_space<vmem>>, %arg4: memref<1x32x16xf32, #tpu.memory_space<vmem>>) attributes {dimension_semantics = [#tpu.dimension_semantics<parallel>, #tpu.dimension_semantics<parallel>], iteration_bounds = array<i64: 2, 1>, scalar_prefetch = 0 : i64, scratch_operands = 0 : i64, tpu.core_type = #tpu.core_type<tc>, window_params = [{transform_indices = @transform_0, window_bounds = array<i64: 1, 32, 16>}, {transform_indices = @transform_1, window_bounds = array<i64: 1, 16, 16>}, {transform_indices = @transform_2, window_bounds = array<i64: 1, 32, 16>}]} {
    %c0 = arith.constant 0 : index
    %c0_0 = arith.constant 0 : index
    %c0_1 = arith.constant 0 : index
    %0 = vector.load %arg2[%c0, %c0_0, %c0_1] : memref<1x32x16xf32, #tpu.memory_space<vmem>>, vector<1x32x16xf32>
    %c0_2 = arith.constant 0 : index
    %c0_3 = arith.constant 0 : index
    %c0_4 = arith.constant 0 : index
    %1 = vector.load %arg3[%c0_2, %c0_3, %c0_4] : memref<1x16x16xf32, #tpu.memory_space<vmem>>, vector<1x16x16xf32>
    "tpu.trace_start"() <{level = 10 : i32, message = "bmp,bpq->bmq"}> : () -> ()
    %cst = arith.constant dense<0.000000e+00> : vector<1x32x16xf32>
    %2 = tpu.matmul %0, %1, %cst {dimension_numbers = #tpu.dot_dimension_numbers<[2], [1], [1], [2], [0, 0, 0, 1, 1, 2], [0], [0]>} : vector<1x32x16xf32>, vector<1x16x16xf32>, vector<1x32x16xf32> -> vector<1x32x16xf32>
    "tpu.trace_stop"() : () -> ()
    %c0_5 = arith.constant 0 : index
    %c0_6 = arith.constant 0 : index
    %c0_7 = arith.constant 0 : index
    %3 = vector.load %arg4[%c0_5, %c0_6, %c0_7] : memref<1x32x16xf32, #tpu.memory_space<vmem>>, vector<1x32x16xf32>
    tpu.vector_store %arg4[%c0_5, %c0_6, %c0_7], %2 {strides = array<i32>} : memref<1x32x16xf32, #tpu.memory_space<vmem>>, vector<1x32x16xf32>,
    return
  }
  func.func @transform_0(%arg0: i32, %arg1: i32) -> (i32, i32, i32) {
    %c0_i32 = arith.constant 0 : i32
    %c0_i32_0 = arith.constant 0 : i32
    return %arg0, %arg1, %c0_i32 : i32, i32, i32
  }
  func.func @transform_1(%arg0: i32, %arg1: i32) -> (i32, i32, i32) {
    %c0_i32 = arith.constant 0 : i32
    %c0_i32_0 = arith.constant 0 : i32
    %c0_i32_1 = arith.constant 0 : i32
    return %arg0, %c0_i32, %c0_i32_0 : i32, i32, i32
  }
  func.func @transform_2(%arg0: i32, %arg1: i32) -> (i32, i32, i32) {
    %c0_i32 = arith.constant 0 : i32
    %c0_i32_0 = arith.constant 0 : i32
    return %arg0, %arg1, %c0_i32 : i32, i32, i32
  }
}

</mosaic_0001>

<llo_original>
// kernel: tpu_custom_call.1
$region0: #{tpu_custom_call.1}
  #allocation0 [shape = 'u32[]', space=smem, size = 0x4, offset = 0x4, fixed_abs, tag = 'smem constant byte address 0x4 - core index']
  #allocation1 [shape = 'u32[144,128]{1,0:T(1,128)}', space=vmem, size = 0x12000, scoped, tag = 'internal scratch']
  %s0 = inlined_call_operand.vmem [shape: f32[2,32,16], index: 0, kind: input, shape index: {}]
  %s1 = inlined_call_operand.vmem [shape: f32[2,16,16], index: 1, kind: input, shape index: {}]
  %s2 = inlined_call_operand.vmem [shape: f32[2,32,16], index: 2, kind: output, shape index: {}]
  %s3 = sld [smem:[#allocation0]]
  $region41: #{tpu_custom_call.1} parent=0
    _
  %s5 = ssub.s32 1, %s3
  %s6 = scalar_select 0, %s5, %s3
  loop: start=0, step=1, limit=4
  $region2: #{tpu_custom_call.1} parent=0 // loop_pre_header
    _
  $region3: #{tpu_custom_call.1} parent=0 // loop_header
    %s8 = sphi 0, %s12
    %p9 = scmp.ge.s32.totalorder %s8, 4
    %s15 = sphi 0, %s27
    %s16 = sphi 0, %s23
    %s17 = sphi 0, %s15
    %s18 = sphi 0, %s16
    %s19 = sphi 0, %s17
    %s20 = sphi 0, %s18
    %s32 = sphi 0, %s34
    %s35 = sphi 0, %s32
    %s36 = sphi 0, %s35
    %s52 = sphi 0, %s36
    %s58 = sphi 0, %s60
    %s61 = sphi 0, %s58
    %s62 = sphi 0, %s61
    %s78 = sphi 0, %s62
    %s86 = sphi 0, %s88
    %s89 = sphi 0, %s86
    %s90 = sphi 0, %s89
    %s106 = sphi 0, %s90
  $region4: #{tpu_custom_call.1} parent=0 // loop_header_branch
    %11 = sbr.rel (%p9) target = $region8
  $region5: #{tpu_custom_call.1} parent=0 // loop_body
    %s13 = ssub.s32 %s8, 1
    %s14 = ssub.s32 %s8, 2
    %s21 = sadd.s32 1, %s16
    %p22 = scmp.ge.s32.totalorder %s21, 1
    %s23 = scalar_select %p22, 0, %s21
    %s24 = sadd.s32 1, %s15
    %s25 = scalar_select %p22, %s24, %s15
    %p26 = scmp.ge.s32.totalorder %s25, 2
    %s27 = scalar_select %p26, 0, %s25
    %s28 = ssub.s32 %s15, %s27
    %s29 = ssub.s32 %s16, %s23
    %s30 = sor.u32 %s28, %s29
    %p31 = scmp.eq.s32.totalorder %s30, 0
    %s33 = sadd.s32 %s32, 1
    %s34 = scalar_select %p31, %s32, %s33
    %p37 = pneg %p31
    %p38 = scmp.eq.s32.totalorder %s8, 1
    %p39 = por %p37, %p38
    %p40 = scmp.ne.s32.totalorder %s32, %s35
    %p41 = scmp.eq.s32.totalorder %s8, 0
    %p42 = por %p40, %p41
    %p43 = scmp.ne.s32.totalorder %s32, %s35
    %p44 = scmp.eq.s32.totalorder %s13, 1
    %p45 = por %p43, %p44
    %p46 = scmp.ne.s32.totalorder %s35, %s36
    %p47 = scmp.eq.s32.totalorder %s13, 0
    %p48 = por %p46, %p47
    %p49 = scmp.ne.s32.totalorder %s35, %s36
    %p50 = scmp.eq.s32.totalorder %s14, 1
    %p51 = por %p49, %p50
    %p53 = scmp.ne.s32.totalorder %s36, %s52
    %p54 = scmp.eq.s32.totalorder %s14, 0
    %p55 = por %p53, %p54
    %s56 = ssub.s32 %s15, %s27
    %p57 = scmp.eq.s32.totalorder %s56, 0
    %s59 = sadd.s32 %s58, 1
    %s60 = scalar_select %p57, %s58, %s59
    %p63 = pneg %p57
    %p64 = scmp.eq.s32.totalorder %s8, 1
    %p65 = por %p63, %p64
    %p66 = scmp.ne.s32.totalorder %s58, %s61
    %p67 = scmp.eq.s32.totalorder %s8, 0
    %p68 = por %p66, %p67
    %p69 = scmp.ne.s32.totalorder %s58, %s61
    %p70 = scmp.eq.s32.totalorder %s13, 1
    %p71 = por %p69, %p70
    %p72 = scmp.ne.s32.totalorder %s61, %s62
    %p73 = scmp.eq.s32.totalorder %s13, 0
    %p74 = por %p72, %p73
    %p75 = scmp.ne.s32.totalorder %s61, %s62
    %p76 = scmp.eq.s32.totalorder %s14, 1
    %p77 = por %p75, %p76
    %p79 = scmp.ne.s32.totalorder %s62, %s78
    %p80 = scmp.eq.s32.totalorder %s14, 0
    %p81 = por %p79, %p80
    %s82 = ssub.s32 %s15, %s27
    %s83 = ssub.s32 %s16, %s23
    %s84 = sor.u32 %s82, %s83
    %p85 = scmp.eq.s32.totalorder %s84, 0
    %s87 = sadd.s32 %s86, 1
    %s88 = scalar_select %p85, %s86, %s87
    %p91 = pneg %p85
    %p92 = scmp.eq.s32.totalorder %s8, 1
    %p93 = por %p91, %p92
    %p94 = scmp.ne.s32.totalorder %s86, %s89
    %p95 = scmp.eq.s32.totalorder %s8, 0
    %p96 = por %p94, %p95
    %p97 = scmp.ne.s32.totalorder %s86, %s89
    %p98 = scmp.eq.s32.totalorder %s13, 1
    %p99 = por %p97, %p98
    %p100 = scmp.ne.s32.totalorder %s89, %s90
    %p101 = scmp.eq.s32.totalorder %s13, 0
    %p102 = por %p100, %p101
    %p103 = scmp.ne.s32.totalorder %s89, %s90
    %p104 = scmp.eq.s32.totalorder %s14, 1
    %p105 = por %p103, %p104
    %p107 = scmp.ne.s32.totalorder %s90, %s106
    %p108 = scmp.eq.s32.totalorder %s14, 0
    %p109 = por %p107, %p108
    %p110 = scmp.le.s32.totalorder 1, %s8
    %p111 = scmp.lt.s32.totalorder %s8, 3
    %p112 = pnand %p110, %p111
    %p113 = pneg %p112
    // Predicated region
    $region9: #{tpu_custom_call.1} parent=5 // pred_check
      _
    $region10: #{tpu_custom_call.1} parent=5 // pred_check_branch
      %115 = sbr.rel (%p112) target = $region12
    $region11: #{tpu_custom_call.1} parent=5 // pred_region
      %s116 = ssub.s32 %s8, 1
    $region12: #{tpu_custom_call.1} parent=5 // pred_fallthru
      _
    %p117 = scmp.lt.s32.totalorder %s8, 2
    // Predicated region
    $region13: #{tpu_custom_call.1} parent=5 // pred_check
      %p118 = pneg %p117
    $region14: #{tpu_custom_call.1} parent=5 // pred_check_branch
      %120 = sbr.rel (%p118) target = $region16
    $region15: #{tpu_custom_call.1} parent=5 // pred_region
      // Predicated region
      $region17: #{tpu_custom_call.1} parent=15 // pred_check
        %p121 = pneg %p42
      $region18: #{tpu_custom_call.1} parent=15 // pred_check_branch
        %123 = sbr.rel (%p121) target = $region20
      $region19: #{tpu_custom_call.1} parent=15 // pred_region
        %s124 = smul.u32 4, %s16
        %p125 = scmp.lt.s32.totalorder %s15, 1
        %s126 = scalar_select %p125, %s15, 1
        %p127 = scmp.lt.s32.totalorder %s124, 3
        %s128 = scalar_select %p127, %s124, 3
        %s129 = smul.addr %s126, 4
        %s130 = sadd.s32 %s128, %s129
        %s131 = smul.addr %s130, 8
        %s132 = scalar_lea.vmem %s0, %s131
        %s133 = smul.u32 4, %s16
      $region20: #{tpu_custom_call.1} parent=15 // pred_fallthru
        _
      // Predicated region
      $region21: #{tpu_custom_call.1} parent=15 // pred_check
        %p134 = pneg %p68
      $region22: #{tpu_custom_call.1} parent=15 // pred_check_branch
        %136 = sbr.rel (%p134) target = $region24
      $region23: #{tpu_custom_call.1} parent=15 // pred_region
        %p137 = scmp.lt.s32.totalorder %s15, 1
        %s138 = scalar_select %p137, %s15, 1
        %s139 = smul.addr %s138, 2
        %s140 = smul.addr %s139, 8
        %s141 = scalar_lea.vmem %s1, %s140
      $region24: #{tpu_custom_call.1} parent=15 // pred_fallthru
        _
    $region16: #{tpu_custom_call.1} parent=5 // pred_fallthru
      _
    %p142 = scmp.le.s32.totalorder 1, %s8
    %p143 = scmp.lt.s32.totalorder %s8, 3
    %p144 = pnand %p142, %p143
    %p145 = pneg %p144
    // Predicated region
    $region25: #{tpu_custom_call.1} parent=5 // pred_check
      _
    $region26: #{tpu_custom_call.1} parent=5 // pred_check_branch
      %147 = sbr.rel (%p144) target = $region28
    $region27: #{tpu_custom_call.1} parent=5 // pred_region
      %s148 = ssub.s32 %s8, 1
      %s149 = smul.u32 4, %s18
      %p150 = scmp.lt.s32.totalorder %s17, 1
      %s151 = scalar_select %p150, %s17, 1
      %p152 = scmp.lt.s32.totalorder %s149, 3
      %s153 = scalar_select %p152, %s149, 3
      %s154 = smul.addr %s151, 4
      %s155 = sadd.s32 %s153, %s154
      %s156 = smul.addr %s155, 8
      %s157 = scalar_lea.vmem %s0, %s156
      %p158 = pneg %p48
      %p159 = pneg %p45
      %p160 = scmp.lt.s32.totalorder %s17, 1
      %s161 = scalar_select %p160, %s17, 1
      %s162 = smul.addr %s161, 2
      %s163 = smul.addr %s162, 8
      %s164 = scalar_lea.vmem %s1, %s163
      %p165 = pneg %p74
      %p166 = pneg %p71
      %p167 = pneg %p102
      %p168 = pneg %p99
      %s169 = smul.u32 4, %s18
      %p170 = scmp.lt.s32.totalorder %s17, 1
      %s171 = scalar_select %p170, %s17, 1
      %p172 = scmp.lt.s32.totalorder %s169, 3
      %s173 = scalar_select %p172, %s169, 3
      %s174 = smul.addr %s171, 4
      %s175 = sadd.s32 %s173, %s174
      %s176 = smul.addr %s175, 8
      %s177 = scalar_lea.vmem %s2, %s176
      %s178 = smul.u32 4, %s18
      %p179 = scmp.lt.s32.totalorder %s17, 1
      %s180 = scalar_select %p179, %s17, 1
      %p181 = scmp.lt.s32.totalorder %s178, 3
      %s182 = scalar_select %p181, %s178, 3
      %s183 = smul.addr %s180, 4
      %s184 = sadd.s32 %s182, %s183
      %s185 = smul.addr %s184, 8
      %s186 = scalar_lea.vmem %s0, %s185
      %s187 = smul.u32 4, %s18
      %p188 = scmp.lt.s32.totalorder %s17, 1
      %s189 = scalar_select %p188, %s17, 1
      %s190 = smul.addr %s189, 2
      %s191 = smul.addr %s190, 8
      %s192 = scalar_lea.vmem %s1, %s191
      %s193 = smul.u32 4, %s18
      %p194 = scmp.lt.s32.totalorder %s17, 1
      %s195 = scalar_select %p194, %s17, 1
      %p196 = scmp.lt.s32.totalorder %s193, 3
      %s197 = scalar_select %p196, %s193, 3
      %s198 = smul.addr %s195, 4
      %s199 = sadd.s32 %s197, %s198
      %s200 = smul.addr %s199, 8
      %s201 = scalar_lea.vmem %s2, %s200
      %s202 = smul.u32 4, %s18
      %v203 = vld [vmem:[%s186] sm:$0xff]
      %v204 = vld [vmem:[%s186 + $0x8] sm:$0xff]
      %v205 = vld [vmem:[%s186 + $0x10] sm:$0xff]
      %v206 = vld [vmem:[%s186 + $0x18] sm:$0xff]
      %v207 = vld [vmem:[%s192] sm:$0xff]
      %v208 = vld [vmem:[%s192 + $0x8] sm:$0xff]
      %vm209 = vcmask 130048
      %v211 = vsel %vm209, %v203, 0
      %v214 = vsel %vm209, %v204, 0
      %v217 = vsel %vm209, %v205, 0
      %v220 = vsel %vm209, %v206, 0
      %222 = vmatprep.subr.mxu0 0.0
      %223 = vmatpush1.msra.mxu0 0.0
      %224 = vmatprep.subr.mxu0 0.0
      %225 = vmatpush1.msra.mxu0 0.0
      %226 = vmatprep.subr.mxu0 0.0
      %227 = vmatpush1.msra.mxu0 0.0
      %228 = vmatprep.subr.mxu0 0.0
      %229 = vmatpush1.msra.mxu0 0.0
      %230 = vmatprep.subr.mxu0 0.0
      %231 = vmatpush1.msra.mxu0 0.0
      %232 = vmatprep.subr.mxu0 0.0
      %233 = vmatpush1.msra.mxu0 0.0
      %234 = vmatprep.subr.mxu0 0.0
      %235 = vmatpush1.msra.mxu0 0.0
      %236 = vmatprep.subr.mxu0 0.0
      %237 = vmatpush1.msra.mxu0 0.0
      %238 = vmatprep.subr.mxu0 0.0
      %239 = vmatpush1.msra.mxu0 0.0
      %240 = vmatprep.subr.mxu0 0.0
      %241 = vmatpush1.msra.mxu0 0.0
      %242 = vmatprep.subr.mxu0 0.0
      %243 = vmatpush1.msra.mxu0 0.0
      %244 = vmatprep.subr.mxu0 0.0
      %245 = vmatpush1.msra.mxu0 0.0
      %246 = vmatprep.subr.mxu0 0.0
      %247 = vmatpush1.msra.mxu0 0.0
      %248 = vmatprep.subr.mxu0 0.0
      %249 = vmatpush1.msra.mxu0 0.0
      %250 = vmatprep.subr.mxu0 0.0
      %251 = vmatpush1.msra.mxu0 %v208
      %252 = vmatprep.subr.mxu0 0.0
      %253 = vmatpush1.msra.mxu0 %v207
      %254 = vmatprep.subr.mxu0 0.0
      %255 = vmatpush2.msra.mxu0 0.0
      %256 = vmatprep.subr.mxu0 0.0
      %257 = vmatpush2.msra.mxu0 0.0
      %258 = vmatprep.subr.mxu0 0.0
      %259 = vmatpush2.msra.mxu0 0.0
      %260 = vmatprep.subr.mxu0 0.0
      %261 = vmatpush2.msra.mxu0 0.0
      %262 = vmatprep.subr.mxu0 0.0
      %263 = vmatpush2.msra.mxu0 0.0
      %264 = vmatprep.subr.mxu0 0.0
      %265 = vmatpush2.msra.mxu0 0.0
      %266 = vmatprep.subr.mxu0 0.0
      %267 = vmatpush2.msra.mxu0 0.0
      %268 = vmatprep.subr.mxu0 0.0
      %269 = vmatpush2.msra.mxu0 0.0
      %270 = vmatprep.subr.mxu0 0.0
      %271 = vmatpush2.msra.mxu0 0.0
      %272 = vmatprep.subr.mxu0 0.0
      %273 = vmatpush2.msra.mxu0 0.0
      %274 = vmatprep.subr.mxu0 0.0
      %275 = vmatpush2.msra.mxu0 0.0
      %276 = vmatprep.subr.mxu0 0.0
      %277 = vmatpush2.msra.mxu0 0.0
      %278 = vmatprep.subr.mxu0 0.0
      %279 = vmatpush2.msra.mxu0 0.0
      %280 = vmatprep.subr.mxu0 0.0
      %281 = vmatpush2.msra.mxu0 0.0
      %282 = vmatprep.subr.mxu0 0.0
      %283 = vmatpush2.msra.mxu0 0.0
      %284 = vmatprep.subr.mxu0 0.0
      %285 = vmatpush2.msra.mxu0 0.0
      %286 = vmatprep.mubr.f32.mxu0 0.0
      %287 = vmatmul.mubr.f32.gmra.mxu0 %v211
      %v288 = vpop.f32.mrf.mxu0
      %v289 = vadd.f32 0.0, %v288
      %v290 = vpop.f32.mrf.mxu0
      %291 = vmatprep.mubr.f32.mxu0 0.0
      %292 = vmatmul.mubr.f32.gmra.mxu0 %v214
      %v293 = vpop.f32.mrf.mxu0
      %v294 = vadd.f32 0.0, %v293
      %v295 = vpop.f32.mrf.mxu0
      %296 = vmatprep.mubr.f32.mxu0 0.0
      %297 = vmatmul.mubr.f32.gmra.mxu0 %v217
      %v298 = vpop.f32.mrf.mxu0
      %v299 = vadd.f32 0.0, %v298
      %v300 = vpop.f32.mrf.mxu0
      %301 = vmatprep.mubr.f32.mxu0 0.0
      %302 = vmatmul.mubr.f32.gmra.mxu0 %v220
      %v303 = vpop.f32.mrf.mxu0
      %v304 = vadd.f32 0.0, %v303
      %v305 = vpop.f32.mrf.mxu0
      %306 = vdwg.mxu0
      %307 = vst.msk [vmem:[%s201] sm:$0xff] %vm209, %v289
      %308 = vst.msk [vmem:[%s201 + $0x8] sm:$0xff] %vm209, %v294
      %309 = vst.msk [vmem:[%s201 + $0x10] sm:$0xff] %vm209, %v299
      %310 = vst.msk [vmem:[%s201 + $0x18] sm:$0xff] %vm209, %v304
      %s311 = smul.u32 4, %s18
      %p312 = scmp.lt.s32.totalorder %s17, 1
      %s313 = scalar_select %p312, %s17, 1
      %p314 = scmp.lt.s32.totalorder %s311, 3
      %s315 = scalar_select %p314, %s311, 3
      %s316 = smul.addr %s313, 4
      %s317 = sadd.s32 %s315, %s316
      %s318 = smul.addr %s317, 8
      %s319 = scalar_lea.vmem %s2, %s318
      // Predicated region
      $region29: #{tpu_custom_call.1} parent=27 // pred_check
        %p320 = pneg %p99
      $region30: #{tpu_custom_call.1} parent=27 // pred_check_branch
        %322 = sbr.rel (%p320) target = $region32
      $region31: #{tpu_custom_call.1} parent=27 // pred_region
        %s323 = smul.u32 4, %s18
      $region32: #{tpu_custom_call.1} parent=27 // pred_fallthru
        _
    $region28: #{tpu_custom_call.1} parent=5 // pred_fallthru
      _
    %p324 = scmp.le.s32.totalorder 2, %s8
    // Predicated region
    $region33: #{tpu_custom_call.1} parent=5 // pred_check
      %p325 = pneg %p324
    $region34: #{tpu_custom_call.1} parent=5 // pred_check_branch
      %327 = sbr.rel (%p325) target = $region36
    $region35: #{tpu_custom_call.1} parent=5 // pred_region
      %s328 = ssub.s32 %s8, 2
      // Predicated region
      $region37: #{tpu_custom_call.1} parent=35 // pred_check
        %p329 = pneg %p105
      $region38: #{tpu_custom_call.1} parent=35 // pred_check_branch
        %331 = sbr.rel (%p329) target = $region40
      $region39: #{tpu_custom_call.1} parent=35 // pred_region
        %s332 = smul.u32 4, %s20
        %p333 = scmp.lt.s32.totalorder %s19, 1
        %s334 = scalar_select %p333, %s19, 1
        %p335 = scmp.lt.s32.totalorder %s332, 3
        %s336 = scalar_select %p335, %s332, 3
        %s337 = smul.addr %s334, 4
        %s338 = sadd.s32 %s336, %s337
        %s339 = smul.addr %s338, 8
        %s340 = scalar_lea.vmem %s2, %s339
      $region40: #{tpu_custom_call.1} parent=35 // pred_fallthru
        _
    $region36: #{tpu_custom_call.1} parent=5 // pred_fallthru
      _
  $region6: #{tpu_custom_call.1} parent=0 // loop_footer
    %s12 = sadd.s32 1, %s8
  $region7: #{tpu_custom_call.1} parent=0 // loop_footer_branch
    %7 = sbr.rel target = $region3
  $region8: #{tpu_custom_call.1} parent=0 // loop_exit
    _

</llo_original>
